<compile_context>
chip_gen: v5e
topology: v5e:2x2
jax: 0.10.0
libtpu: 0.0.40
codegen_flags: <defaults>
</compile_context>

<pallas_src>
import jax
import jax.numpy as jnp
from jax.experimental import pallas as pl
from jax.experimental.pallas import tpu as pltpu

N_INPUT = 16
N_OUTPUT = 4
N_HIDDEN = 32
KERNEL_SIZE = 5
N_KERNELS = 4
L_OUT = N_INPUT - KERNEL_SIZE + 1        # 12
FLAT = L_OUT * N_KERNELS                 # 48 (torch.flatten of (n_kernels, L_out))

LANES = 128                              # hidden dims padded to one vreg lane width
OUT_LANES = 8                            # narrow output slab (4 real logits + 4 zero)
MAX_B_TILE = 2048                        # fp32 double-buffered tiles ~<1 MiB: safe on v5e/v6e/v7x
SMALL_BATCH = 32                         # below this, plain XLA beats a padded pallas_call
W_ROWS = 4 * LANES                       # 4 padded 128x128 weight blocks
P_ROWS = W_ROWS + 8                      # + 4 bias rows, padded to 8 sublanes -> 520


def convnet_kernel(x_ref, p_ref, o_ref):
    # x_ref: (B_TILE, 16)   natural-width states (no lane padding in HBM)
    # p_ref: (520, 128)     rows [0,128)=W_toep, [128,256)=W0^T, [256,384)=W1^T,
    #                       [384,512)=W2^T, rows 512..515 = bc_flat, b0, b1, b2
    # o_ref: (B_TILE, 8)    lanes >= N_OUTPUT stay zero
    x = x_ref[...]

    # conv1 + flatten (Toeplitz matmul, K = 16) + bias + ReLU
    h = jnp.dot(x, p_ref[0:N_INPUT, :], preferred_element_type=jnp.float32)
    h = jnp.maximum(h + p_ref[W_ROWS + 0], 0.0)
    # TODO(synk): nn.Dropout(0.2) treated as identity (eval-mode semantics).

    # linear0 + ReLU
    h = jnp.dot(h, p_ref[1 * LANES:2 * LANES, :], preferred_element_type=jnp.float32)
    h = jnp.maximum(h + p_ref[W_ROWS + 1], 0.0)

    # linear1 + ReLU
    h = jnp.dot(h, p_ref[2 * LANES:3 * LANES, :], preferred_element_type=jnp.float32)
    h = jnp.maximum(h + p_ref[W_ROWS + 2], 0.0)

    # output layer (no activation); only the first OUT_LANES lanes are stored
    out = jnp.dot(h, p_ref[3 * LANES:4 * LANES, :],
                  preferred_element_type=jnp.float32) + p_ref[W_ROWS + 3]
    o_ref[...] = out[:, :OUT_LANES]


def _pick_tile(b):
    """Largest tile giving >=2 grid steps when possible (v7x: both TCs get work)."""
    half = -(-b // 2)                 # ceil(B / 2)
    half = -(-half // 8) * 8          # round up to a sublane multiple
    return max(8, min(MAX_B_TILE, half))


def _forward_xla(x, p_slab):
    """Plain-XLA small-batch fast path (identical math to the kernel)."""
    h = jnp.maximum(x @ p_slab[:N_INPUT, :] + p_slab[W_ROWS + 0], 0.0)
    h = jnp.maximum(h @ p_slab[1 * LANES:2 * LANES, :] + p_slab[W_ROWS + 1], 0.0)
    h = jnp.maximum(h @ p_slab[2 * LANES:3 * LANES, :] + p_slab[W_ROWS + 2], 0.0)
    return (h @ p_slab[3 * LANES:4 * LANES, :] + p_slab[W_ROWS + 3])[:, :N_OUTPUT]


def convnet_forward_batch(states, p_slab):
    """states: (B, N_INPUT) float32 -> (B, N_OUTPUT) float32."""
    states = jnp.asarray(states, jnp.float32)
    B = states.shape[0]
    if B < SMALL_BATCH:
        return _forward_xla(states, p_slab)

    b_tile = _pick_tile(B)
    n_tiles = pl.cdiv(B, b_tile)
    Bp = n_tiles * b_tile
    x = states if Bp == B else (
        jnp.zeros((Bp, N_INPUT), jnp.float32).at[:B, :].set(states))

    out = pl.pallas_call(
        convnet_kernel,
        out_shape=jax.ShapeDtypeStruct((Bp, OUT_LANES), jnp.float32),
        grid_spec=pltpu.PrefetchScalarGridSpec(
            num_scalar_prefetch=0,
            grid=(n_tiles,),
            in_specs=[
                # last block dim == full array dim (16): legal, no lane padding in HBM
                pl.BlockSpec((b_tile, N_INPUT), lambda i: (i, 0)),
                # constant block index: the 260 KiB slab is DMA'd once and stays
                # resident in VMEM across all grid steps (no per-step re-fetch)
                pl.BlockSpec((P_ROWS, LANES), lambda i: (0, 0)),
            ],
            out_specs=pl.BlockSpec((b_tile, OUT_LANES), lambda i: (i, 0))),
        compiler_params=pltpu.CompilerParams(
            dimension_semantics=("parallel",)),   # shards batch tiles across v7x TCs
    )(x, p_slab)
    return out[:B, :N_OUTPUT]


def convnet_forward(state, p_slab):
    """Single state (N_INPUT,) -> (N_OUTPUT,), matching the torch module."""
    return convnet_forward_batch(state.reshape(1, N_INPUT), p_slab)[0]


def init_params(key):
    """PyTorch-default-style U(-1/sqrt(fan_in), +) init, torch weight layouts."""
    ks = jax.random.split(key, 8)

    def u(k, shape, fan_in):
        b = 1.0 / jnp.sqrt(float(fan_in))
        return jax.random.uniform(k, shape, jnp.float32, -b, b)

    return dict(
        wc=u(ks[0], (N_KERNELS, KERNEL_SIZE), KERNEL_SIZE),   # conv1.weight (C_in=1 squeezed)
        bc=u(ks[1], (N_KERNELS,), KERNEL_SIZE),               # conv1.bias
        w0=u(ks[2], (2 * N_HIDDEN, FLAT), FLAT),              # linear0.weight
        b0=u(ks[3], (2 * N_HIDDEN,), FLAT),
        w1=u(ks[4], (N_HIDDEN, 2 * N_HIDDEN), 2 * N_HIDDEN),  # linear1.weight
        b1=u(ks[5], (N_HIDDEN,), 2 * N_HIDDEN),
        w2=u(ks[6], (N_OUTPUT, N_HIDDEN), N_HIDDEN),          # output_layer.weight
        b2=u(ks[7], (N_OUTPUT,), N_HIDDEN),
    )


def pack_params(raw):
    """Host-side precompute: Toeplitz conv weight + single (520, 128) f32 slab."""
    # im2col / Toeplitz form of Conv1d(1, n_kernels, kernel_size):
    #   flat[k*L_OUT + l] = sum_j x[l + j] * wc[k, j]   (torch.flatten order)
    k_i, j_i, l_i = jnp.meshgrid(jnp.arange(N_KERNELS), jnp.arange(KERNEL_SIZE),
                                 jnp.arange(L_OUT), indexing="ij")
    w_toep = (jnp.zeros((N_INPUT, FLAT), jnp.float32)
              .at[(l_i + j_i).ravel(), (k_i * L_OUT + l_i).ravel()]
              .set(raw["wc"][k_i, j_i].ravel()))
    bc_flat = jnp.repeat(raw["bc"], L_OUT)

    def pad_w(w):      # (in, out) -> (128, 128) zero-padded
        return jnp.zeros((LANES, LANES), jnp.float32).at[:w.shape[0], :w.shape[1]].set(w)

    def pad_b(b):      # (out,) -> (128,) zero-padded
        return jnp.zeros((LANES,), jnp.float32).at[:b.shape[0]].set(b)

    bias_block = jnp.stack([pad_b(bc_flat), pad_b(raw["b0"]),
                            pad_b(raw["b1"]), pad_b(raw["b2"]),
                            jnp.zeros((LANES,), jnp.float32),
                            jnp.zeros((LANES,), jnp.float32),
                            jnp.zeros((LANES,), jnp.float32),
                            jnp.zeros((LANES,), jnp.float32)], axis=0)

    slab = jnp.concatenate([pad_w(w_toep),
                            pad_w(raw["w0"].T),
                            pad_w(raw["w1"].T),
                            pad_w(raw["w2"].T),
                            bias_block], axis=0)
    assert slab.shape == (P_ROWS, LANES)
    return slab


def reference(states, raw):
    """Pure-JAX transcription of the PyTorch forward pass (dropout = identity)."""
    def one(x):
        cols = jnp.stack([x[j:j + L_OUT] for j in range(KERNEL_SIZE)], axis=0)  # (ks, L_out)
        conv = jnp.maximum(raw["wc"] @ cols + raw["bc"][:, None], 0.0)          # (k, L_out)
        flat = conv.reshape(-1)                                                 # torch.flatten order
        h0 = jnp.maximum(flat @ raw["w0"].T + raw["b0"], 0.0)
        h1 = jnp.maximum(h0 @ raw["w1"].T + raw["b1"], 0.0)
        return h1 @ raw["w2"].T + raw["b2"]
    return jax.vmap(one)(states)


if __name__ == "__main__":
    key = jax.random.PRNGKey(0)
    pkey, xkey = jax.random.split(key)
    raw = init_params(pkey)
    p_slab = pack_params(raw)

    # Main batched path: B=512 -> 2 grid tiles of 256 rows (feeds both v7x TCs).
    B = 512
    states = jax.random.normal(xkey, (B, N_INPUT), jnp.float32)
    out_b = jax.block_until_ready(convnet_forward_batch(states, p_slab))
    ref_b = reference(states, raw)
    assert out_b.shape == (B, N_OUTPUT)
    assert jnp.allclose(out_b, ref_b, atol=1e-3, rtol=1e-3), \
        float(jnp.max(jnp.abs(out_b - ref_b)))

    # Ragged batch (exercises row padding inside the kernel path).
    Br = 100
    out_r = jax.block_until_ready(convnet_forward_batch(states[:Br], p_slab))
    assert out_r.shape == (Br, N_OUTPUT)
    assert jnp.allclose(out_r, ref_b[:Br], atol=1e-3, rtol=1e-3)

    # Single-state torch-style call (small-batch XLA fast path).
    out_1 = jax.block_until_ready(convnet_forward(states[0], p_slab))
    assert out_1.shape == (N_OUTPUT,)
    assert jnp.allclose(out_1, ref_b[0], atol=1e-3, rtol=1e-3)

    print("KERNEL_OK")
</pallas_src>

<mosaic_0001>
module attributes {stable_mosaic.version = 11 : i64} {
  func.func @convnet_kernel(%arg0: i32, %arg1: memref<256x16xf32, #tpu.memory_space<vmem>>, %arg2: memref<520x128xf32, #tpu.memory_space<vmem>>, %arg3: memref<256x8xf32, #tpu.memory_space<vmem>>) attributes {dimension_semantics = [#tpu.dimension_semantics<parallel>], iteration_bounds = array<i64: 2>, scalar_prefetch = 0 : i64, scratch_operands = 0 : i64, tpu.core_type = #tpu.core_type<tc>, window_params = [{transform_indices = @transform_0, window_bounds = array<i64: 256, 16>}, {pipeline_mode = #tpu.pipeline_mode<synchronous>, transform_indices = @transform_1, window_bounds = array<i64: 520, 128>}, {transform_indices = @transform_2, window_bounds = array<i64: 256, 8>}]} {
    %c0 = arith.constant 0 : index
    %c0_0 = arith.constant 0 : index
    %0 = vector.load %arg1[%c0, %c0_0] : memref<256x16xf32, #tpu.memory_space<vmem>>, vector<256x16xf32>
    %c0_1 = arith.constant 0 : index
    %c0_2 = arith.constant 0 : index
    %1 = vector.load %arg2[%c0_1, %c0_2] : memref<520x128xf32, #tpu.memory_space<vmem>>, vector<16x128xf32>
    %cst = arith.constant dense<0.000000e+00> : vector<256x128xf32>
    %2 = tpu.matmul %0, %1, %cst {dimension_numbers = #tpu.dot_dimension_numbers<[1], [0], [0], [1], [0, 0, 1, 1], [], []>} : vector<256x16xf32>, vector<16x128xf32>, vector<256x128xf32> -> vector<256x128xf32>
    %c512 = arith.constant 512 : index
    %c0_3 = arith.constant 0 : index
    %3 = vector.load %arg2[%c512, %c0_3] : memref<520x128xf32, #tpu.memory_space<vmem>>, vector<1x128xf32>
    %4 = vector.shape_cast %3 : vector<1x128xf32> to vector<128xf32>
    %5 = vector.shape_cast %4 : vector<128xf32> to vector<1x128xf32>
    %6 = vector.broadcast %5 : vector<1x128xf32> to vector<256x128xf32>
    %7 = arith.addf %2, %6 : vector<256x128xf32>
    %cst_4 = arith.constant 0.000000e+00 : f32
    %8 = vector.broadcast %cst_4 : f32 to vector<256x128xf32>
    %9 = arith.maximumf %7, %8 : vector<256x128xf32>
    %c128 = arith.constant 128 : index
    %c0_5 = arith.constant 0 : index
    %10 = vector.load %arg2[%c128, %c0_5] : memref<520x128xf32, #tpu.memory_space<vmem>>, vector<128x128xf32>
    %cst_6 = arith.constant dense<0.000000e+00> : vector<256x128xf32>
    %11 = tpu.matmul %9, %10, %cst_6 {dimension_numbers = #tpu.dot_dimension_numbers<[1], [0], [0], [1], [0, 0, 1, 1], [], []>} : vector<256x128xf32>, vector<128x128xf32>, vector<256x128xf32> -> vector<256x128xf32>
    %c513 = arith.constant 513 : index
    %c0_7 = arith.constant 0 : index
    %12 = vector.load %arg2[%c513, %c0_7] : memref<520x128xf32, #tpu.memory_space<vmem>>, vector<1x128xf32>
    %13 = vector.shape_cast %12 : vector<1x128xf32> to vector<128xf32>
    %14 = vector.shape_cast %13 : vector<128xf32> to vector<1x128xf32>
    %15 = vector.broadcast %14 : vector<1x128xf32> to vector<256x128xf32>
    %16 = arith.addf %11, %15 : vector<256x128xf32>
    %cst_8 = arith.constant 0.000000e+00 : f32
    %17 = vector.broadcast %cst_8 : f32 to vector<256x128xf32>
    %18 = arith.maximumf %16, %17 : vector<256x128xf32>
    %c256 = arith.constant 256 : index
    %c0_9 = arith.constant 0 : index
    %19 = vector.load %arg2[%c256, %c0_9] : memref<520x128xf32, #tpu.memory_space<vmem>>, vector<128x128xf32>
    %cst_10 = arith.constant dense<0.000000e+00> : vector<256x128xf32>
    %20 = tpu.matmul %18, %19, %cst_10 {dimension_numbers = #tpu.dot_dimension_numbers<[1], [0], [0], [1], [0, 0, 1, 1], [], []>} : vector<256x128xf32>, vector<128x128xf32>, vector<256x128xf32> -> vector<256x128xf32>
    %c514 = arith.constant 514 : index
    %c0_11 = arith.constant 0 : index
    %21 = vector.load %arg2[%c514, %c0_11] : memref<520x128xf32, #tpu.memory_space<vmem>>, vector<1x128xf32>
    %22 = vector.shape_cast %21 : vector<1x128xf32> to vector<128xf32>
    %23 = vector.shape_cast %22 : vector<128xf32> to vector<1x128xf32>
    %24 = vector.broadcast %23 : vector<1x128xf32> to vector<256x128xf32>
    %25 = arith.addf %20, %24 : vector<256x128xf32>
    %cst_12 = arith.constant 0.000000e+00 : f32
    %26 = vector.broadcast %cst_12 : f32 to vector<256x128xf32>
    %27 = arith.maximumf %25, %26 : vector<256x128xf32>
    %c384 = arith.constant 384 : index
    %c0_13 = arith.constant 0 : index
    %28 = vector.load %arg2[%c384, %c0_13] : memref<520x128xf32, #tpu.memory_space<vmem>>, vector<128x128xf32>
    %cst_14 = arith.constant dense<0.000000e+00> : vector<256x128xf32>
    %29 = tpu.matmul %27, %28, %cst_14 {dimension_numbers = #tpu.dot_dimension_numbers<[1], [0], [0], [1], [0, 0, 1, 1], [], []>} : vector<256x128xf32>, vector<128x128xf32>, vector<256x128xf32> -> vector<256x128xf32>
    %c515 = arith.constant 515 : index
    %c0_15 = arith.constant 0 : index
    %30 = vector.load %arg2[%c515, %c0_15] : memref<520x128xf32, #tpu.memory_space<vmem>>, vector<1x128xf32>
    %31 = vector.shape_cast %30 : vector<1x128xf32> to vector<128xf32>
    %32 = vector.shape_cast %31 : vector<128xf32> to vector<1x128xf32>
    %33 = vector.broadcast %32 : vector<1x128xf32> to vector<256x128xf32>
    %34 = arith.addf %29, %33 : vector<256x128xf32>
    %35 = vector.extract_strided_slice %34 {offsets = [0, 0], sizes = [256, 8], strides = [1, 1]} : vector<256x128xf32> to vector<256x8xf32>
    %c0_16 = arith.constant 0 : index
    %c0_17 = arith.constant 0 : index
    %36 = vector.load %arg3[%c0_16, %c0_17] : memref<256x8xf32, #tpu.memory_space<vmem>>, vector<256x8xf32>
    tpu.vector_store %arg3[%c0_16, %c0_17], %35 {strides = array<i32>} : memref<256x8xf32, #tpu.memory_space<vmem>>, vector<256x8xf32>,
    return
  }
  func.func @transform_0(%arg0: i32) -> (i32, i32) {
    %c0_i32 = arith.constant 0 : i32
    %c0_i32_0 = arith.constant 0 : i32
    return %arg0, %c0_i32 : i32, i32
  }
  func.func @transform_1(%arg0: i32) -> (i32, i32) {
    %c0_i32 = arith.constant 0 : i32
    %c0_i32_0 = arith.constant 0 : i32
    %c0_i32_1 = arith.constant 0 : i32
    return %c0_i32, %c0_i32_0 : i32, i32
  }
  func.func @transform_2(%arg0: i32) -> (i32, i32) {
    %c0_i32 = arith.constant 0 : i32
    %c0_i32_0 = arith.constant 0 : i32
    return %arg0, %c0_i32 : i32, i32
  }
}

</mosaic_0001>

<llo_original>
// kernel: tpu_custom_call.1
$region0: #{tpu_custom_call.1}
  #allocation0 [shape = 'u32[]', space=smem, size = 0x4, offset = 0x4, fixed_abs, tag = 'smem constant byte address 0x4 - core index']
  #allocation1 [shape = 'u32[72,128]{1,0:T(1,128)}', space=vmem, size = 0x9000, scoped, tag = 'internal scratch']
  %s0 = inlined_call_operand.vmem [shape: f32[512,16], index: 0, kind: input, shape index: {}]
  %s1 = inlined_call_operand.vmem [shape: f32[520,128], index: 1, kind: input, shape index: {}]
  %s2 = inlined_call_operand.vmem [shape: f32[512,8], index: 2, kind: output, shape index: {}]
  %s3 = sld [smem:[#allocation0]]
  $region41: #{tpu_custom_call.1} parent=0
    _
  %s5 = ssub.s32 1, %s3
  %s6 = scalar_select 0, %s5, %s3
  loop: start=0, step=1, limit=4
  $region2: #{tpu_custom_call.1} parent=0 // loop_pre_header
    _
  $region3: #{tpu_custom_call.1} parent=0 // loop_header
    %s8 = sphi 0, %s12
    %p9 = scmp.ge.s32.totalorder %s8, 4
    %s18 = sphi 0, %s20
    %s21 = sphi 0, %s18
    %s22 = sphi 0, %s21
    %s38 = sphi 0, %s22
    %s42 = sphi 0, %s42
    %s44 = sphi 0, %s42
    %s45 = sphi 0, %s44
    %s59 = sphi 0, %s45
    %s65 = sphi 0, %s67
    %s68 = sphi 0, %s65
    %s69 = sphi 0, %s68
    %s85 = sphi 0, %s69
  $region4: #{tpu_custom_call.1} parent=0 // loop_header_branch
    %11 = sbr.rel (%p9) target = $region8
  $region5: #{tpu_custom_call.1} parent=0 // loop_body
    %s13 = ssub.s32 %s8, 1
    %s14 = ssub.s32 %s8, 2
    %s15 = sadd.s32 %s8, 1
    %s16 = ssub.s32 %s8, %s15
    %p17 = scmp.eq.s32.totalorder %s16, 0
    %s19 = sadd.s32 %s18, 1
    %s20 = scalar_select %p17, %s18, %s19
    %p23 = pneg %p17
    %p24 = scmp.eq.s32.totalorder %s8, 1
    %p25 = por %p23, %p24
    %p26 = scmp.ne.s32.totalorder %s18, %s21
    %p27 = scmp.eq.s32.totalorder %s8, 0
    %p28 = por %p26, %p27
    %p29 = scmp.ne.s32.totalorder %s18, %s21
    %p30 = scmp.eq.s32.totalorder %s13, 1
    %p31 = por %p29, %p30
    %p32 = scmp.ne.s32.totalorder %s21, %s22
    %p33 = scmp.eq.s32.totalorder %s13, 0
    %p34 = por %p32, %p33
    %p35 = scmp.ne.s32.totalorder %s21, %s22
    %p36 = scmp.eq.s32.totalorder %s14, 1
    %p37 = por %p35, %p36
    %p39 = scmp.ne.s32.totalorder %s22, %s38
    %p40 = scmp.eq.s32.totalorder %s14, 0
    %p41 = por %p39, %p40
    %s43 = sadd.s32 %s42, 1
    %p46 = scmp.eq.s32.totalorder %s8, 1
    %p47 = scmp.ne.s32.totalorder %s42, %s44
    %p48 = scmp.eq.s32.totalorder %s8, 0
    %p49 = por %p47, %p48
    %p50 = scmp.ne.s32.totalorder %s42, %s44
    %p51 = scmp.eq.s32.totalorder %s13, 1
    %p52 = por %p50, %p51
    %p53 = scmp.ne.s32.totalorder %s44, %s45
    %p54 = scmp.eq.s32.totalorder %s13, 0
    %p55 = por %p53, %p54
    %p56 = scmp.ne.s32.totalorder %s44, %s45
    %p57 = scmp.eq.s32.totalorder %s14, 1
    %p58 = por %p56, %p57
    %p60 = scmp.ne.s32.totalorder %s45, %s59
    %p61 = scmp.eq.s32.totalorder %s14, 0
    %p62 = por %p60, %p61
    %s63 = ssub.s32 %s8, %s15
    %p64 = scmp.eq.s32.totalorder %s63, 0
    %s66 = sadd.s32 %s65, 1
    %s67 = scalar_select %p64, %s65, %s66
    %p70 = pneg %p64
    %p71 = scmp.eq.s32.totalorder %s8, 1
    %p72 = por %p70, %p71
    %p73 = scmp.ne.s32.totalorder %s65, %s68
    %p74 = scmp.eq.s32.totalorder %s8, 0
    %p75 = por %p73, %p74
    %p76 = scmp.ne.s32.totalorder %s65, %s68
    %p77 = scmp.eq.s32.totalorder %s13, 1
    %p78 = por %p76, %p77
    %p79 = scmp.ne.s32.totalorder %s68, %s69
    %p80 = scmp.eq.s32.totalorder %s13, 0
    %p81 = por %p79, %p80
    %p82 = scmp.ne.s32.totalorder %s68, %s69
    %p83 = scmp.eq.s32.totalorder %s14, 1
    %p84 = por %p82, %p83
    %p86 = scmp.ne.s32.totalorder %s69, %s85
    %p87 = scmp.eq.s32.totalorder %s14, 0
    %p88 = por %p86, %p87
    %p89 = scmp.le.s32.totalorder 1, %s8
    %p90 = scmp.lt.s32.totalorder %s8, 3
    %p91 = pnand %p89, %p90
    %p92 = pneg %p91
    // Predicated region
    $region9: #{tpu_custom_call.1} parent=5 // pred_check
      _
    $region10: #{tpu_custom_call.1} parent=5 // pred_check_branch
      %94 = sbr.rel (%p91) target = $region12
    $region11: #{tpu_custom_call.1} parent=5 // pred_region
      %s95 = ssub.s32 %s8, 1
      // Predicated region
      $region13: #{tpu_custom_call.1} parent=11 // pred_check
        %p96 = pneg %p55
      $region14: #{tpu_custom_call.1} parent=11 // pred_check_branch
        %98 = sbr.rel (%p96) target = $region16
      $region15: #{tpu_custom_call.1} parent=11 // pred_region
        _
      $region16: #{tpu_custom_call.1} parent=11 // pred_fallthru
        _
    $region12: #{tpu_custom_call.1} parent=5 // pred_fallthru
      _
    %p99 = scmp.lt.s32.totalorder %s8, 2
    // Predicated region
    $region17: #{tpu_custom_call.1} parent=5 // pred_check
      %p100 = pneg %p99
    $region18: #{tpu_custom_call.1} parent=5 // pred_check_branch
      %102 = sbr.rel (%p100) target = $region20
    $region19: #{tpu_custom_call.1} parent=5 // pred_region
      // Predicated region
      $region21: #{tpu_custom_call.1} parent=19 // pred_check
        %p103 = pneg %p28
      $region22: #{tpu_custom_call.1} parent=19 // pred_check_branch
        %105 = sbr.rel (%p103) target = $region24
      $region23: #{tpu_custom_call.1} parent=19 // pred_region
        %s106 = smul.u32 32, %s8
        %p107 = scmp.lt.s32.totalorder %s106, 63
        %s108 = scalar_select %p107, %s106, 63
        %s109 = smul.addr %s108, 8
        %s110 = scalar_lea.vmem %s0, %s109
        %s111 = smul.u32 32, %s8
      $region24: #{tpu_custom_call.1} parent=19 // pred_fallthru
        _
    $region20: #{tpu_custom_call.1} parent=5 // pred_fallthru
      _
    %p112 = scmp.le.s32.totalorder 1, %s8
    %p113 = scmp.lt.s32.totalorder %s8, 3
    %p114 = pnand %p112, %p113
    %p115 = pneg %p114
    // Predicated region
    $region25: #{tpu_custom_call.1} parent=5 // pred_check
      _
    $region26: #{tpu_custom_call.1} parent=5 // pred_check_branch
      %117 = sbr.rel (%p114) target = $region28
    $region27: #{tpu_custom_call.1} parent=5 // pred_region
      %s118 = ssub.s32 %s8, 1
      %s119 = smul.u32 32, %s13
      %p120 = scmp.lt.s32.totalorder %s119, 63
      %s121 = scalar_select %p120, %s119, 63
      %s122 = smul.addr %s121, 8
      %s123 = scalar_lea.vmem %s0, %s122
      %p124 = pneg %p34
      %p125 = pneg %p31
      %p126 = pneg %p55
      %p127 = pneg %p52
      %p128 = pneg %p81
      %p129 = pneg %p78
      %s130 = smul.u32 32, %s13
      %p131 = scmp.lt.s32.totalorder %s130, 63
      %s132 = scalar_select %p131, %s130, 63
      %s133 = smul.addr %s132, 8
      %s134 = scalar_lea.vmem %s2, %s133
      %s135 = smul.u32 32, %s13
      %p136 = scmp.lt.s32.totalorder %s135, 63
      %s137 = scalar_select %p136, %s135, 63
      %s138 = smul.addr %s137, 8
      %s139 = scalar_lea.vmem %s0, %s138
      %s140 = smul.u32 32, %s13
      %s141 = smul.u32 32, %s13
      %p142 = scmp.lt.s32.totalorder %s141, 63
      %s143 = scalar_select %p142, %s141, 63
      %s144 = smul.addr %s143, 8
      %s145 = scalar_lea.vmem %s2, %s144
      %s146 = smul.u32 32, %s13
      %v147 = vld [vmem:[%s139] sm:$0xff]
      %v148 = vld [vmem:[%s139 + $0x8] sm:$0xff]
      %v149 = vld [vmem:[%s139 + $0x10] sm:$0xff]
      %v150 = vld [vmem:[%s139 + $0x18] sm:$0xff]
      %v151 = vld [vmem:[%s139 + $0x20] sm:$0xff]
      %v152 = vld [vmem:[%s139 + $0x28] sm:$0xff]
      %v153 = vld [vmem:[%s139 + $0x30] sm:$0xff]
      %v154 = vld [vmem:[%s139 + $0x38] sm:$0xff]
      %v155 = vld [vmem:[%s139 + $0x40] sm:$0xff]
      %v156 = vld [vmem:[%s139 + $0x48] sm:$0xff]
      %v157 = vld [vmem:[%s139 + $0x50] sm:$0xff]
      %v158 = vld [vmem:[%s139 + $0x58] sm:$0xff]
      %v159 = vld [vmem:[%s139 + $0x60] sm:$0xff]
      %v160 = vld [vmem:[%s139 + $0x68] sm:$0xff]
      %v161 = vld [vmem:[%s139 + $0x70] sm:$0xff]
      %v162 = vld [vmem:[%s139 + $0x78] sm:$0xff]
      %v163 = vld [vmem:[%s139 + $0x80] sm:$0xff]
      %v164 = vld [vmem:[%s139 + $0x88] sm:$0xff]
      %v165 = vld [vmem:[%s139 + $0x90] sm:$0xff]
      %v166 = vld [vmem:[%s139 + $0x98] sm:$0xff]
      %v167 = vld [vmem:[%s139 + $0xa0] sm:$0xff]
      %v168 = vld [vmem:[%s139 + $0xa8] sm:$0xff]
      %v169 = vld [vmem:[%s139 + $0xb0] sm:$0xff]
      %v170 = vld [vmem:[%s139 + $0xb8] sm:$0xff]
      %v171 = vld [vmem:[%s139 + $0xc0] sm:$0xff]
      %v172 = vld [vmem:[%s139 + $0xc8] sm:$0xff]
      %v173 = vld [vmem:[%s139 + $0xd0] sm:$0xff]
      %v174 = vld [vmem:[%s139 + $0xd8] sm:$0xff]
      %v175 = vld [vmem:[%s139 + $0xe0] sm:$0xff]
      %v176 = vld [vmem:[%s139 + $0xe8] sm:$0xff]
      %v177 = vld [vmem:[%s139 + $0xf0] sm:$0xff]
      %v178 = vld [vmem:[%s139 + $0xf8] sm:$0xff]
      %v179 = vld [vmem:[%s1] sm:$0xff]
      %v180 = vld [vmem:[%s1 + $0x8] sm:$0xff]
      %v181 = vld [vmem:[%s1 + $0x200] sm:$0x1]
      %v182 = vperm.slane %v181, 0
      %vm183 = vcmask 130048
      %v185 = vsel %vm183, %v147, 0
      %v188 = vsel %vm183, %v148, 0
      %v191 = vsel %vm183, %v149, 0
      %v194 = vsel %vm183, %v150, 0
      %v197 = vsel %vm183, %v151, 0
      %v200 = vsel %vm183, %v152, 0
      %v203 = vsel %vm183, %v153, 0
      %v206 = vsel %vm183, %v154, 0
      %v209 = vsel %vm183, %v155, 0
      %v212 = vsel %vm183, %v156, 0
      %v215 = vsel %vm183, %v157, 0
      %v218 = vsel %vm183, %v158, 0
      %v221 = vsel %vm183, %v159, 0
      %v224 = vsel %vm183, %v160, 0
      %v227 = vsel %vm183, %v161, 0
      %v230 = vsel %vm183, %v162, 0
      %v233 = vsel %vm183, %v163, 0
      %v236 = vsel %vm183, %v164, 0
      %v239 = vsel %vm183, %v165, 0
      %v242 = vsel %vm183, %v166, 0
      %v245 = vsel %vm183, %v167, 0
      %v248 = vsel %vm183, %v168, 0
      %v251 = vsel %vm183, %v169, 0
      %v254 = vsel %vm183, %v170, 0
      %v257 = vsel %vm183, %v171, 0
      %v260 = vsel %vm183, %v172, 0
      %v263 = vsel %vm183, %v173, 0
      %v266 = vsel %vm183, %v174, 0
      %v269 = vsel %vm183, %v175, 0
      %v272 = vsel %vm183, %v176, 0
      %v275 = vsel %vm183, %v177, 0
      %v278 = vsel %vm183, %v178, 0
      %280 = vmatpush.msra.mxu0 0.0
      %281 = vmatpush.msra.mxu0 0.0
      %282 = vmatpush.msra.mxu0 0.0
      %283 = vmatpush.msra.mxu0 0.0
      %284 = vmatpush.msra.mxu0 0.0
      %285 = vmatpush.msra.mxu0 0.0
      %286 = vmatpush.msra.mxu0 0.0
      %287 = vmatpush.msra.mxu0 0.0
      %288 = vmatpush.msra.mxu0 0.0
      %289 = vmatpush.msra.mxu0 0.0
      %290 = vmatpush.msra.mxu0 0.0
      %291 = vmatpush.msra.mxu0 0.0
      %292 = vmatpush.msra.mxu0 0.0
      %293 = vmatpush.msra.mxu0 0.0
      %294 = vmatpush.msra.mxu0 %v180
      %295 = vmatpush.msra.mxu0 %v179
      %296 = vmatmul.f32.gmra.mxu0 %v185
      %v297 = vpop.f32.mrf.mxu0
      %v298 = vadd.f32 %v182, %v297
      %299 = vmatmul.f32.gmra.mxu0 %v188
      %v300 = vpop.f32.mrf.mxu0
      %v301 = vadd.f32 %v182, %v300
      %302 = vmatmul.f32.gmra.mxu0 %v191
      %v303 = vpop.f32.mrf.mxu0
      %v304 = vadd.f32 %v182, %v303
      %305 = vmatmul.f32.gmra.mxu0 %v194
      %v306 = vpop.f32.mrf.mxu0
      %v307 = vadd.f32 %v182, %v306
      %308 = vmatmul.f32.gmra.mxu0 %v197
      %v309 = vpop.f32.mrf.mxu0
      %v310 = vadd.f32 %v182, %v309
      %311 = vmatmul.f32.gmra.mxu0 %v200
      %v312 = vpop.f32.mrf.mxu0
      %v313 = vadd.f32 %v182, %v312
      %314 = vmatmul.f32.gmra.mxu0 %v203
      %v315 = vpop.f32.mrf.mxu0
      %v316 = vadd.f32 %v182, %v315
      %317 = vmatmul.f32.gmra.mxu0 %v206
      %v318 = vpop.f32.mrf.mxu0
      %v319 = vadd.f32 %v182, %v318
      %320 = vmatmul.f32.gmra.mxu0 %v209
      %v321 = vpop.f32.mrf.mxu0
      %v322 = vadd.f32 %v182, %v321
      %323 = vmatmul.f32.gmra.mxu0 %v212
      %v324 = vpop.f32.mrf.mxu0
      %v325 = vadd.f32 %v182, %v324
      %326 = vmatmul.f32.gmra.mxu0 %v215
      %v327 = vpop.f32.mrf.mxu0
      %v328 = vadd.f32 %v182, %v327
      %329 = vmatmul.f32.gmra.mxu0 %v218
      %v330 = vpop.f32.mrf.mxu0
      %v331 = vadd.f32 %v182, %v330
      %332 = vmatmul.f32.gmra.mxu0 %v221
      %v333 = vpop.f32.mrf.mxu0
      %v334 = vadd.f32 %v182, %v333
      %335 = vmatmul.f32.gmra.mxu0 %v224
      %v336 = vpop.f32.mrf.mxu0
      %v337 = vadd.f32 %v182, %v336
      %338 = vmatmul.f32.gmra.mxu0 %v227
      %v339 = vpop.f32.mrf.mxu0
      %v340 = vadd.f32 %v182, %v339
      %341 = vmatmul.f32.gmra.mxu0 %v230
      %v342 = vpop.f32.mrf.mxu0
      %v343 = vadd.f32 %v182, %v342
      %344 = vmatmul.f32.gmra.mxu0 %v233
      %v345 = vpop.f32.mrf.mxu0
      %v346 = vadd.f32 %v182, %v345
      %347 = vmatmul.f32.gmra.mxu0 %v236
      %v348 = vpop.f32.mrf.mxu0
      %v349 = vadd.f32 %v182, %v348
      %350 = vmatmul.f32.gmra.mxu0 %v239
      %v351 = vpop.f32.mrf.mxu0
      %v352 = vadd.f32 %v182, %v351
      %353 = vmatmul.f32.gmra.mxu0 %v242
      %v354 = vpop.f32.mrf.mxu0
      %v355 = vadd.f32 %v182, %v354
      %356 = vmatmul.f32.gmra.mxu0 %v245
      %v357 = vpop.f32.mrf.mxu0
      %v358 = vadd.f32 %v182, %v357
      %359 = vmatmul.f32.gmra.mxu0 %v248
      %v360 = vpop.f32.mrf.mxu0
      %v361 = vadd.f32 %v182, %v360
      %362 = vmatmul.f32.gmra.mxu0 %v251
      %v363 = vpop.f32.mrf.mxu0
      %v364 = vadd.f32 %v182, %v363
      %365 = vmatmul.f32.gmra.mxu0 %v254
      %v366 = vpop.f32.mrf.mxu0
      %v367 = vadd.f32 %v182, %v366
      %368 = vmatmul.f32.gmra.mxu0 %v257
      %v369 = vpop.f32.mrf.mxu0
      %v370 = vadd.f32 %v182, %v369
      %371 = vmatmul.f32.gmra.mxu0 %v260
      %v372 = vpop.f32.mrf.mxu0
      %v373 = vadd.f32 %v182, %v372
      %374 = vmatmul.f32.gmra.mxu0 %v263
      %v375 = vpop.f32.mrf.mxu0
      %v376 = vadd.f32 %v182, %v375
      %377 = vmatmul.f32.gmra.mxu0 %v266
      %v378 = vpop.f32.mrf.mxu0
      %v379 = vadd.f32 %v182, %v378
      %380 = vmatmul.f32.gmra.mxu0 %v269
      %v381 = vpop.f32.mrf.mxu0
      %v382 = vadd.f32 %v182, %v381
      %383 = vmatmul.f32.gmra.mxu0 %v272
      %v384 = vpop.f32.mrf.mxu0
      %v385 = vadd.f32 %v182, %v384
      %386 = vmatmul.f32.gmra.mxu0 %v275
      %v387 = vpop.f32.mrf.mxu0
      %v388 = vadd.f32 %v182, %v387
      %389 = vmatmul.f32.gmra.mxu0 %v278
      %v390 = vpop.f32.mrf.mxu0
      %v391 = vadd.f32 %v182, %v390
      %392 = vdwg.mxu0
      %v393 = vmax.f32 %v298, 0.0
      %v394 = vmax.f32 %v301, 0.0
      %v395 = vmax.f32 %v304, 0.0
      %v396 = vmax.f32 %v307, 0.0
      %v397 = vmax.f32 %v310, 0.0
      %v398 = vmax.f32 %v313, 0.0
      %v399 = vmax.f32 %v316, 0.0
      %v400 = vmax.f32 %v319, 0.0
      %v401 = vmax.f32 %v322, 0.0
      %v402 = vmax.f32 %v325, 0.0
      %v403 = vmax.f32 %v328, 0.0
      %v404 = vmax.f32 %v331, 0.0
      %v405 = vmax.f32 %v334, 0.0
      %v406 = vmax.f32 %v337, 0.0
      %v407 = vmax.f32 %v340, 0.0
      %v408 = vmax.f32 %v343, 0.0
      %v409 = vmax.f32 %v346, 0.0
      %v410 = vmax.f32 %v349, 0.0
      %v411 = vmax.f32 %v352, 0.0
      %v412 = vmax.f32 %v355, 0.0
      %v413 = vmax.f32 %v358, 0.0
      %v414 = vmax.f32 %v361, 0.0
      %v415 = vmax.f32 %v364, 0.0
      %v416 = vmax.f32 %v367, 0.0
      %v417 = vmax.f32 %v370, 0.0
      %v418 = vmax.f32 %v373, 0.0
      %v419 = vmax.f32 %v376, 0.0
      %v420 = vmax.f32 %v379, 0.0
      %v421 = vmax.f32 %v382, 0.0
      %v422 = vmax.f32 %v385, 0.0
      %v423 = vmax.f32 %v388, 0.0
      %v424 = vmax.f32 %v391, 0.0
      %v425 = vld [vmem:[%s1 + $0x80] sm:$0xff]
      %v426 = vld [vmem:[%s1 + $0x88] sm:$0xff]
      %v427 = vld [vmem:[%s1 + $0x90] sm:$0xff]
      %v428 = vld [vmem:[%s1 + $0x98] sm:$0xff]
      %v429 = vld [vmem:[%s1 + $0xa0] sm:$0xff]
      %v430 = vld [vmem:[%s1 + $0xa8] sm:$0xff]
      %v431 = vld [vmem:[%s1 + $0xb0] sm:$0xff]
      %v432 = vld [vmem:[%s1 + $0xb8] sm:$0xff]
      %v433 = vld [vmem:[%s1 + $0xc0] sm:$0xff]
      %v434 = vld [vmem:[%s1 + $0xc8] sm:$0xff]
      %v435 = vld [vmem:[%s1 + $0xd0] sm:$0xff]
      %v436 = vld [vmem:[%s1 + $0xd8] sm:$0xff]
      %v437 = vld [vmem:[%s1 + $0xe0] sm:$0xff]
      %v438 = vld [vmem:[%s1 + $0xe8] sm:$0xff]
      %v439 = vld [vmem:[%s1 + $0xf0] sm:$0xff]
      %v440 = vld [vmem:[%s1 + $0xf8] sm:$0xff]
      %v441 = vld [vmem:[%s1 + $0x201] sm:$0x1]
      %v442 = vperm.slane %v441, 0
      %443 = vmatpush.msra.mxu0 %v440
      %444 = vmatpush.msra.mxu0 %v439
      %445 = vmatpush.msra.mxu0 %v438
      %446 = vmatpush.msra.mxu0 %v437
      %447 = vmatpush.msra.mxu0 %v436
      %448 = vmatpush.msra.mxu0 %v435
      %449 = vmatpush.msra.mxu0 %v434
      %450 = vmatpush.msra.mxu0 %v433
      %451 = vmatpush.msra.mxu0 %v432
      %452 = vmatpush.msra.mxu0 %v431
      %453 = vmatpush.msra.mxu0 %v430
      %454 = vmatpush.msra.mxu0 %v429
      %455 = vmatpush.msra.mxu0 %v428
      %456 = vmatpush.msra.mxu0 %v427
      %457 = vmatpush.msra.mxu0 %v426
      %458 = vmatpush.msra.mxu0 %v425
      %459 = vmatmul.f32.gmra.mxu0 %v393
      %v460 = vpop.f32.mrf.mxu0
      %v461 = vadd.f32 %v442, %v460
      %462 = vmatmul.f32.gmra.mxu0 %v394
      %v463 = vpop.f32.mrf.mxu0
      %v464 = vadd.f32 %v442, %v463
      %465 = vmatmul.f32.gmra.mxu0 %v395
      %v466 = vpop.f32.mrf.mxu0
      %v467 = vadd.f32 %v442, %v466
      %468 = vmatmul.f32.gmra.mxu0 %v396
      %v469 = vpop.f32.mrf.mxu0
      %v470 = vadd.f32 %v442, %v469
      %471 = vmatmul.f32.gmra.mxu0 %v397
      %v472 = vpop.f32.mrf.mxu0
      %v473 = vadd.f32 %v442, %v472
      %474 = vmatmul.f32.gmra.mxu0 %v398
      %v475 = vpop.f32.mrf.mxu0
      %v476 = vadd.f32 %v442, %v475
      %477 = vmatmul.f32.gmra.mxu0 %v399
      %v478 = vpop.f32.mrf.mxu0
      %v479 = vadd.f32 %v442, %v478
      %480 = vmatmul.f32.gmra.mxu0 %v400
      %v481 = vpop.f32.mrf.mxu0
      %v482 = vadd.f32 %v442, %v481
      %483 = vmatmul.f32.gmra.mxu0 %v401
      %v484 = vpop.f32.mrf.mxu0
      %v485 = vadd.f32 %v442, %v484
      %486 = vmatmul.f32.gmra.mxu0 %v402
      %v487 = vpop.f32.mrf.mxu0
      %v488 = vadd.f32 %v442, %v487
      %489 = vmatmul.f32.gmra.mxu0 %v403
      %v490 = vpop.f32.mrf.mxu0
      %v491 = vadd.f32 %v442, %v490
      %492 = vmatmul.f32.gmra.mxu0 %v404
      %v493 = vpop.f32.mrf.mxu0
      %v494 = vadd.f32 %v442, %v493
      %495 = vmatmul.f32.gmra.mxu0 %v405
      %v496 = vpop.f32.mrf.mxu0
      %v497 = vadd.f32 %v442, %v496
      %498 = vmatmul.f32.gmra.mxu0 %v406
      %v499 = vpop.f32.mrf.mxu0
      %v500 = vadd.f32 %v442, %v499
      %501 = vmatmul.f32.gmra.mxu0 %v407
      %v502 = vpop.f32.mrf.mxu0
      %v503 = vadd.f32 %v442, %v502
      %504 = vmatmul.f32.gmra.mxu0 %v408
      %v505 = vpop.f32.mrf.mxu0
      %v506 = vadd.f32 %v442, %v505
      %507 = vmatmul.f32.gmra.mxu0 %v409
      %v508 = vpop.f32.mrf.mxu0
      %v509 = vadd.f32 %v442, %v508
      %510 = vmatmul.f32.gmra.mxu0 %v410
      %v511 = vpop.f32.mrf.mxu0
      %v512 = vadd.f32 %v442, %v511
      %513 = vmatmul.f32.gmra.mxu0 %v411
      %v514 = vpop.f32.mrf.mxu0
      %v515 = vadd.f32 %v442, %v514
      %516 = vmatmul.f32.gmra.mxu0 %v412
      %v517 = vpop.f32.mrf.mxu0
      %v518 = vadd.f32 %v442, %v517
      %519 = vmatmul.f32.gmra.mxu0 %v413
      %v520 = vpop.f32.mrf.mxu0
      %v521 = vadd.f32 %v442, %v520
      %522 = vmatmul.f32.gmra.mxu0 %v414
      %v523 = vpop.f32.mrf.mxu0
      %v524 = vadd.f32 %v442, %v523
      %525 = vmatmul.f32.gmra.mxu0 %v415
      %v526 = vpop.f32.mrf.mxu0
      %v527 = vadd.f32 %v442, %v526
      %528 = vmatmul.f32.gmra.mxu0 %v416
      %v529 = vpop.f32.mrf.mxu0
      %v530 = vadd.f32 %v442, %v529
      %531 = vmatmul.f32.gmra.mxu0 %v417
      %v532 = vpop.f32.mrf.mxu0
      %v533 = vadd.f32 %v442, %v532
      %534 = vmatmul.f32.gmra.mxu0 %v418
      %v535 = vpop.f32.mrf.mxu0
      %v536 = vadd.f32 %v442, %v535
      %537 = vmatmul.f32.gmra.mxu0 %v419
      %v538 = vpop.f32.mrf.mxu0
      %v539 = vadd.f32 %v442, %v538
      %540 = vmatmul.f32.gmra.mxu0 %v420
      %v541 = vpop.f32.mrf.mxu0
      %v542 = vadd.f32 %v442, %v541
      %543 = vmatmul.f32.gmra.mxu0 %v421
      %v544 = vpop.f32.mrf.mxu0
      %v545 = vadd.f32 %v442, %v544
      %546 = vmatmul.f32.gmra.mxu0 %v422
      %v547 = vpop.f32.mrf.mxu0
      %v548 = vadd.f32 %v442, %v547
      %549 = vmatmul.f32.gmra.mxu0 %v423
      %v550 = vpop.f32.mrf.mxu0
      %v551 = vadd.f32 %v442, %v550
      %552 = vmatmul.f32.gmra.mxu0 %v424
      %v553 = vpop.f32.mrf.mxu0
      %v554 = vadd.f32 %v442, %v553
      %555 = vdwg.mxu0
      %v556 = vmax.f32 %v461, 0.0
      %v557 = vmax.f32 %v464, 0.0
      %v558 = vmax.f32 %v467, 0.0
      %v559 = vmax.f32 %v470, 0.0
      %v560 = vmax.f32 %v473, 0.0
      %v561 = vmax.f32 %v476, 0.0
      %v562 = vmax.f32 %v479, 0.0
      %v563 = vmax.f32 %v482, 0.0
      %v564 = vmax.f32 %v485, 0.0
      %v565 = vmax.f32 %v488, 0.0
      %v566 = vmax.f32 %v491, 0.0
      %v567 = vmax.f32 %v494, 0.0
      %v568 = vmax.f32 %v497, 0.0
      %v569 = vmax.f32 %v500, 0.0
      %v570 = vmax.f32 %v503, 0.0
      %v571 = vmax.f32 %v506, 0.0
      %v572 = vmax.f32 %v509, 0.0
      %v573 = vmax.f32 %v512, 0.0
      %v574 = vmax.f32 %v515, 0.0
      %v575 = vmax.f32 %v518, 0.0
      %v576 = vmax.f32 %v521, 0.0
      %v577 = vmax.f32 %v524, 0.0
      %v578 = vmax.f32 %v527, 0.0
      %v579 = vmax.f32 %v530, 0.0
      %v580 = vmax.f32 %v533, 0.0
      %v581 = vmax.f32 %v536, 0.0
      %v582 = vmax.f32 %v539, 0.0
      %v583 = vmax.f32 %v542, 0.0
      %v584 = vmax.f32 %v545, 0.0
      %v585 = vmax.f32 %v548, 0.0
      %v586 = vmax.f32 %v551, 0.0
      %v587 = vmax.f32 %v554, 0.0
      %v588 = vld [vmem:[%s1 + $0x100] sm:$0xff]
      %v589 = vld [vmem:[%s1 + $0x108] sm:$0xff]
      %v590 = vld [vmem:[%s1 + $0x110] sm:$0xff]
      %v591 = vld [vmem:[%s1 + $0x118] sm:$0xff]
      %v592 = vld [vmem:[%s1 + $0x120] sm:$0xff]
      %v593 = vld [vmem:[%s1 + $0x128] sm:$0xff]
      %v594 = vld [vmem:[%s1 + $0x130] sm:$0xff]
      %v595 = vld [vmem:[%s1 + $0x138] sm:$0xff]
      %v596 = vld [vmem:[%s1 + $0x140] sm:$0xff]
      %v597 = vld [vmem:[%s1 + $0x148] sm:$0xff]
      %v598 = vld [vmem:[%s1 + $0x150] sm:$0xff]
      %v599 = vld [vmem:[%s1 + $0x158] sm:$0xff]
      %v600 = vld [vmem:[%s1 + $0x160] sm:$0xff]
      %v601 = vld [vmem:[%s1 + $0x168] sm:$0xff]
      %v602 = vld [vmem:[%s1 + $0x170] sm:$0xff]
      %v603 = vld [vmem:[%s1 + $0x178] sm:$0xff]
      %v604 = vld [vmem:[%s1 + $0x202] sm:$0x1]
      %v605 = vperm.slane %v604, 0
      %606 = vmatpush.msra.mxu0 %v603
      %607 = vmatpush.msra.mxu0 %v602
      %608 = vmatpush.msra.mxu0 %v601
      %609 = vmatpush.msra.mxu0 %v600
      %610 = vmatpush.msra.mxu0 %v599
      %611 = vmatpush.msra.mxu0 %v598
      %612 = vmatpush.msra.mxu0 %v597
      %613 = vmatpush.msra.mxu0 %v596
      %614 = vmatpush.msra.mxu0 %v595
      %615 = vmatpush.msra.mxu0 %v594
      %616 = vmatpush.msra.mxu0 %v593
      %617 = vmatpush.msra.mxu0 %v592
      %618 = vmatpush.msra.mxu0 %v591
      %619 = vmatpush.msra.mxu0 %v590
      %620 = vmatpush.msra.mxu0 %v589
      %621 = vmatpush.msra.mxu0 %v588
      %622 = vmatmul.f32.gmra.mxu0 %v556
      %v623 = vpop.f32.mrf.mxu0
      %v624 = vadd.f32 %v605, %v623
      %625 = vmatmul.f32.gmra.mxu0 %v557
      %v626 = vpop.f32.mrf.mxu0
      %v627 = vadd.f32 %v605, %v626
      %628 = vmatmul.f32.gmra.mxu0 %v558
      %v629 = vpop.f32.mrf.mxu0
      %v630 = vadd.f32 %v605, %v629
      %631 = vmatmul.f32.gmra.mxu0 %v559
      %v632 = vpop.f32.mrf.mxu0
      %v633 = vadd.f32 %v605, %v632
      %634 = vmatmul.f32.gmra.mxu0 %v560
      %v635 = vpop.f32.mrf.mxu0
      %v636 = vadd.f32 %v605, %v635
      %637 = vmatmul.f32.gmra.mxu0 %v561
      %v638 = vpop.f32.mrf.mxu0
      %v639 = vadd.f32 %v605, %v638
      %640 = vmatmul.f32.gmra.mxu0 %v562
      %v641 = vpop.f32.mrf.mxu0
      %v642 = vadd.f32 %v605, %v641
      %643 = vmatmul.f32.gmra.mxu0 %v563
      %v644 = vpop.f32.mrf.mxu0
      %v645 = vadd.f32 %v605, %v644
      %646 = vmatmul.f32.gmra.mxu0 %v564
      %v647 = vpop.f32.mrf.mxu0
      %v648 = vadd.f32 %v605, %v647
      %649 = vmatmul.f32.gmra.mxu0 %v565
      %v650 = vpop.f32.mrf.mxu0
      %v651 = vadd.f32 %v605, %v650
      %652 = vmatmul.f32.gmra.mxu0 %v566
      %v653 = vpop.f32.mrf.mxu0
      %v654 = vadd.f32 %v605, %v653
      %655 = vmatmul.f32.gmra.mxu0 %v567
      %v656 = vpop.f32.mrf.mxu0
      %v657 = vadd.f32 %v605, %v656
      %658 = vmatmul.f32.gmra.mxu0 %v568
      %v659 = vpop.f32.mrf.mxu0
      %v660 = vadd.f32 %v605, %v659
      %661 = vmatmul.f32.gmra.mxu0 %v569
      %v662 = vpop.f32.mrf.mxu0
      %v663 = vadd.f32 %v605, %v662
      %664 = vmatmul.f32.gmra.mxu0 %v570
      %v665 = vpop.f32.mrf.mxu0
      %v666 = vadd.f32 %v605, %v665
      %667 = vmatmul.f32.gmra.mxu0 %v571
      %v668 = vpop.f32.mrf.mxu0
      %v669 = vadd.f32 %v605, %v668
      %670 = vmatmul.f32.gmra.mxu0 %v572
      %v671 = vpop.f32.mrf.mxu0
      %v672 = vadd.f32 %v605, %v671
      %673 = vmatmul.f32.gmra.mxu0 %v573
      %v674 = vpop.f32.mrf.mxu0
      %v675 = vadd.f32 %v605, %v674
      %676 = vmatmul.f32.gmra.mxu0 %v574
      %v677 = vpop.f32.mrf.mxu0
      %v678 = vadd.f32 %v605, %v677
      %679 = vmatmul.f32.gmra.mxu0 %v575
      %v680 = vpop.f32.mrf.mxu0
      %v681 = vadd.f32 %v605, %v680
      %682 = vmatmul.f32.gmra.mxu0 %v576
      %v683 = vpop.f32.mrf.mxu0
      %v684 = vadd.f32 %v605, %v683
      %685 = vmatmul.f32.gmra.mxu0 %v577
      %v686 = vpop.f32.mrf.mxu0
      %v687 = vadd.f32 %v605, %v686
      %688 = vmatmul.f32.gmra.mxu0 %v578
      %v689 = vpop.f32.mrf.mxu0
      %v690 = vadd.f32 %v605, %v689
      %691 = vmatmul.f32.gmra.mxu0 %v579
      %v692 = vpop.f32.mrf.mxu0
      %v693 = vadd.f32 %v605, %v692
      %694 = vmatmul.f32.gmra.mxu0 %v580
      %v695 = vpop.f32.mrf.mxu0
      %v696 = vadd.f32 %v605, %v695
      %697 = vmatmul.f32.gmra.mxu0 %v581
      %v698 = vpop.f32.mrf.mxu0
      %v699 = vadd.f32 %v605, %v698
      %700 = vmatmul.f32.gmra.mxu0 %v582
      %v701 = vpop.f32.mrf.mxu0
      %v702 = vadd.f32 %v605, %v701
      %703 = vmatmul.f32.gmra.mxu0 %v583
      %v704 = vpop.f32.mrf.mxu0
      %v705 = vadd.f32 %v605, %v704
      %706 = vmatmul.f32.gmra.mxu0 %v584
      %v707 = vpop.f32.mrf.mxu0
      %v708 = vadd.f32 %v605, %v707
      %709 = vmatmul.f32.gmra.mxu0 %v585
      %v710 = vpop.f32.mrf.mxu0
      %v711 = vadd.f32 %v605, %v710
      %712 = vmatmul.f32.gmra.mxu0 %v586
      %v713 = vpop.f32.mrf.mxu0
      %v714 = vadd.f32 %v605, %v713
      %715 = vmatmul.f32.gmra.mxu0 %v587
      %v716 = vpop.f32.mrf.mxu0
      %v717 = vadd.f32 %v605, %v716
      %718 = vdwg.mxu0
      %v719 = vmax.f32 %v624, 0.0
      %v720 = vmax.f32 %v627, 0.0
      %v721 = vmax.f32 %v630, 0.0
      %v722 = vmax.f32 %v633, 0.0
      %v723 = vmax.f32 %v636, 0.0
      %v724 = vmax.f32 %v639, 0.0
      %v725 = vmax.f32 %v642, 0.0
      %v726 = vmax.f32 %v645, 0.0
      %v727 = vmax.f32 %v648, 0.0
      %v728 = vmax.f32 %v651, 0.0
      %v729 = vmax.f32 %v654, 0.0
      %v730 = vmax.f32 %v657, 0.0
      %v731 = vmax.f32 %v660, 0.0
      %v732 = vmax.f32 %v663, 0.0
      %v733 = vmax.f32 %v666, 0.0
      %v734 = vmax.f32 %v669, 0.0
      %v735 = vmax.f32 %v672, 0.0
      %v736 = vmax.f32 %v675, 0.0
      %v737 = vmax.f32 %v678, 0.0
      %v738 = vmax.f32 %v681, 0.0
      %v739 = vmax.f32 %v684, 0.0
      %v740 = vmax.f32 %v687, 0.0
      %v741 = vmax.f32 %v690, 0.0
      %v742 = vmax.f32 %v693, 0.0
      %v743 = vmax.f32 %v696, 0.0
      %v744 = vmax.f32 %v699, 0.0
      %v745 = vmax.f32 %v702, 0.0
      %v746 = vmax.f32 %v705, 0.0
      %v747 = vmax.f32 %v708, 0.0
      %v748 = vmax.f32 %v711, 0.0
      %v749 = vmax.f32 %v714, 0.0
      %v750 = vmax.f32 %v717, 0.0
      %v751 = vld [vmem:[%s1 + $0x180] sm:$0xff]
      %v752 = vld [vmem:[%s1 + $0x188] sm:$0xff]
      %v753 = vld [vmem:[%s1 + $0x190] sm:$0xff]
      %v754 = vld [vmem:[%s1 + $0x198] sm:$0xff]
      %v755 = vld [vmem:[%s1 + $0x1a0] sm:$0xff]
      %v756 = vld [vmem:[%s1 + $0x1a8] sm:$0xff]
      %v757 = vld [vmem:[%s1 + $0x1b0] sm:$0xff]
      %v758 = vld [vmem:[%s1 + $0x1b8] sm:$0xff]
      %v759 = vld [vmem:[%s1 + $0x1c0] sm:$0xff]
      %v760 = vld [vmem:[%s1 + $0x1c8] sm:$0xff]
      %v761 = vld [vmem:[%s1 + $0x1d0] sm:$0xff]
      %v762 = vld [vmem:[%s1 + $0x1d8] sm:$0xff]
      %v763 = vld [vmem:[%s1 + $0x1e0] sm:$0xff]
      %v764 = vld [vmem:[%s1 + $0x1e8] sm:$0xff]
      %v765 = vld [vmem:[%s1 + $0x1f0] sm:$0xff]
      %v766 = vld [vmem:[%s1 + $0x1f8] sm:$0xff]
      %v767 = vld [vmem:[%s1 + $0x203] sm:$0x1]
      %v768 = vperm.slane %v767, 0
      %769 = vmatpush.msra.mxu0 %v766
      %770 = vmatpush.msra.mxu0 %v765
      %771 = vmatpush.msra.mxu0 %v764
      %772 = vmatpush.msra.mxu0 %v763
      %773 = vmatpush.msra.mxu0 %v762
      %774 = vmatpush.msra.mxu0 %v761
      %775 = vmatpush.msra.mxu0 %v760
      %776 = vmatpush.msra.mxu0 %v759
      %777 = vmatpush.msra.mxu0 %v758
      %778 = vmatpush.msra.mxu0 %v757
      %779 = vmatpush.msra.mxu0 %v756
      %780 = vmatpush.msra.mxu0 %v755
      %781 = vmatpush.msra.mxu0 %v754
      %782 = vmatpush.msra.mxu0 %v753
      %783 = vmatpush.msra.mxu0 %v752
      %784 = vmatpush.msra.mxu0 %v751
      %785 = vmatmul.f32.gmra.mxu0 %v719
      %v786 = vpop.f32.mrf.mxu0
      %v787 = vadd.f32 %v768, %v786
      %788 = vmatmul.f32.gmra.mxu0 %v720
      %v789 = vpop.f32.mrf.mxu0
      %v790 = vadd.f32 %v768, %v789
      %791 = vmatmul.f32.gmra.mxu0 %v721
      %v792 = vpop.f32.mrf.mxu0
      %v793 = vadd.f32 %v768, %v792
      %794 = vmatmul.f32.gmra.mxu0 %v722
      %v795 = vpop.f32.mrf.mxu0
      %v796 = vadd.f32 %v768, %v795
      %797 = vmatmul.f32.gmra.mxu0 %v723
      %v798 = vpop.f32.mrf.mxu0
      %v799 = vadd.f32 %v768, %v798
      %800 = vmatmul.f32.gmra.mxu0 %v724
      %v801 = vpop.f32.mrf.mxu0
      %v802 = vadd.f32 %v768, %v801
      %803 = vmatmul.f32.gmra.mxu0 %v725
      %v804 = vpop.f32.mrf.mxu0
      %v805 = vadd.f32 %v768, %v804
      %806 = vmatmul.f32.gmra.mxu0 %v726
      %v807 = vpop.f32.mrf.mxu0
      %v808 = vadd.f32 %v768, %v807
      %809 = vmatmul.f32.gmra.mxu0 %v727
      %v810 = vpop.f32.mrf.mxu0
      %v811 = vadd.f32 %v768, %v810
      %812 = vmatmul.f32.gmra.mxu0 %v728
      %v813 = vpop.f32.mrf.mxu0
      %v814 = vadd.f32 %v768, %v813
      %815 = vmatmul.f32.gmra.mxu0 %v729
      %v816 = vpop.f32.mrf.mxu0
      %v817 = vadd.f32 %v768, %v816
      %818 = vmatmul.f32.gmra.mxu0 %v730
      %v819 = vpop.f32.mrf.mxu0
      %v820 = vadd.f32 %v768, %v819
      %821 = vmatmul.f32.gmra.mxu0 %v731
      %v822 = vpop.f32.mrf.mxu0
      %v823 = vadd.f32 %v768, %v822
      %824 = vmatmul.f32.gmra.mxu0 %v732
      %v825 = vpop.f32.mrf.mxu0
      %v826 = vadd.f32 %v768, %v825
      %827 = vmatmul.f32.gmra.mxu0 %v733
      %v828 = vpop.f32.mrf.mxu0
      %v829 = vadd.f32 %v768, %v828
      %830 = vmatmul.f32.gmra.mxu0 %v734
      %v831 = vpop.f32.mrf.mxu0
      %v832 = vadd.f32 %v768, %v831
      %833 = vmatmul.f32.gmra.mxu0 %v735
      %v834 = vpop.f32.mrf.mxu0
      %v835 = vadd.f32 %v768, %v834
      %836 = vmatmul.f32.gmra.mxu0 %v736
      %v837 = vpop.f32.mrf.mxu0
      %v838 = vadd.f32 %v768, %v837
      %839 = vmatmul.f32.gmra.mxu0 %v737
      %v840 = vpop.f32.mrf.mxu0
      %v841 = vadd.f32 %v768, %v840
      %842 = vmatmul.f32.gmra.mxu0 %v738
      %v843 = vpop.f32.mrf.mxu0
      %v844 = vadd.f32 %v768, %v843
      %845 = vmatmul.f32.gmra.mxu0 %v739
      %v846 = vpop.f32.mrf.mxu0
      %v847 = vadd.f32 %v768, %v846
      %848 = vmatmul.f32.gmra.mxu0 %v740
      %v849 = vpop.f32.mrf.mxu0
      %v850 = vadd.f32 %v768, %v849
      %851 = vmatmul.f32.gmra.mxu0 %v741
      %v852 = vpop.f32.mrf.mxu0
      %v853 = vadd.f32 %v768, %v852
      %854 = vmatmul.f32.gmra.mxu0 %v742
      %v855 = vpop.f32.mrf.mxu0
      %v856 = vadd.f32 %v768, %v855
      %857 = vmatmul.f32.gmra.mxu0 %v743
      %v858 = vpop.f32.mrf.mxu0
      %v859 = vadd.f32 %v768, %v858
      %860 = vmatmul.f32.gmra.mxu0 %v744
      %v861 = vpop.f32.mrf.mxu0
      %v862 = vadd.f32 %v768, %v861
      %863 = vmatmul.f32.gmra.mxu0 %v745
      %v864 = vpop.f32.mrf.mxu0
      %v865 = vadd.f32 %v768, %v864
      %866 = vmatmul.f32.gmra.mxu0 %v746
      %v867 = vpop.f32.mrf.mxu0
      %v868 = vadd.f32 %v768, %v867
      %869 = vmatmul.f32.gmra.mxu0 %v747
      %v870 = vpop.f32.mrf.mxu0
      %v871 = vadd.f32 %v768, %v870
      %872 = vmatmul.f32.gmra.mxu0 %v748
      %v873 = vpop.f32.mrf.mxu0
      %v874 = vadd.f32 %v768, %v873
      %875 = vmatmul.f32.gmra.mxu0 %v749
      %v876 = vpop.f32.mrf.mxu0
      %v877 = vadd.f32 %v768, %v876
      %878 = vmatmul.f32.gmra.mxu0 %v750
      %v879 = vpop.f32.mrf.mxu0
      %v880 = vadd.f32 %v768, %v879
      %881 = vdwg.mxu0
      %vm882 = vcmask 64512
      %883 = vst.msk [vmem:[%s145] sm:$0xff] %vm882, %v787
      %884 = vst.msk [vmem:[%s145 + $0x8] sm:$0xff] %vm882, %v790
      %885 = vst.msk [vmem:[%s145 + $0x10] sm:$0xff] %vm882, %v793
      %886 = vst.msk [vmem:[%s145 + $0x18] sm:$0xff] %vm882, %v796
      %887 = vst.msk [vmem:[%s145 + $0x20] sm:$0xff] %vm882, %v799
      %888 = vst.msk [vmem:[%s145 + $0x28] sm:$0xff] %vm882, %v802
      %889 = vst.msk [vmem:[%s145 + $0x30] sm:$0xff] %vm882, %v805
      %890 = vst.msk [vmem:[%s145 + $0x38] sm:$0xff] %vm882, %v808
      %891 = vst.msk [vmem:[%s145 + $0x40] sm:$0xff] %vm882, %v811
      %892 = vst.msk [vmem:[%s145 + $0x48] sm:$0xff] %vm882, %v814
      %893 = vst.msk [vmem:[%s145 + $0x50] sm:$0xff] %vm882, %v817
      %894 = vst.msk [vmem:[%s145 + $0x58] sm:$0xff] %vm882, %v820
      %895 = vst.msk [vmem:[%s145 + $0x60] sm:$0xff] %vm882, %v823
      %896 = vst.msk [vmem:[%s145 + $0x68] sm:$0xff] %vm882, %v826
      %897 = vst.msk [vmem:[%s145 + $0x70] sm:$0xff] %vm882, %v829
      %898 = vst.msk [vmem:[%s145 + $0x78] sm:$0xff] %vm882, %v832
      %899 = vst.msk [vmem:[%s145 + $0x80] sm:$0xff] %vm882, %v835
      %900 = vst.msk [vmem:[%s145 + $0x88] sm:$0xff] %vm882, %v838
      %901 = vst.msk [vmem:[%s145 + $0x90] sm:$0xff] %vm882, %v841
      %902 = vst.msk [vmem:[%s145 + $0x98] sm:$0xff] %vm882, %v844
      %903 = vst.msk [vmem:[%s145 + $0xa0] sm:$0xff] %vm882, %v847
      %904 = vst.msk [vmem:[%s145 + $0xa8] sm:$0xff] %vm882, %v850
      %905 = vst.msk [vmem:[%s145 + $0xb0] sm:$0xff] %vm882, %v853
      %906 = vst.msk [vmem:[%s145 + $0xb8] sm:$0xff] %vm882, %v856
      %907 = vst.msk [vmem:[%s145 + $0xc0] sm:$0xff] %vm882, %v859
      %908 = vst.msk [vmem:[%s145 + $0xc8] sm:$0xff] %vm882, %v862
      %909 = vst.msk [vmem:[%s145 + $0xd0] sm:$0xff] %vm882, %v865
      %910 = vst.msk [vmem:[%s145 + $0xd8] sm:$0xff] %vm882, %v868
      %911 = vst.msk [vmem:[%s145 + $0xe0] sm:$0xff] %vm882, %v871
      %912 = vst.msk [vmem:[%s145 + $0xe8] sm:$0xff] %vm882, %v874
      %913 = vst.msk [vmem:[%s145 + $0xf0] sm:$0xff] %vm882, %v877
      %914 = vst.msk [vmem:[%s145 + $0xf8] sm:$0xff] %vm882, %v880
      %s915 = smul.u32 32, %s13
      %p916 = scmp.lt.s32.totalorder %s915, 63
      %s917 = scalar_select %p916, %s915, 63
      %s918 = smul.addr %s917, 8
      %s919 = scalar_lea.vmem %s2, %s918
      // Predicated region
      $region29: #{tpu_custom_call.1} parent=27 // pred_check
        %p920 = pneg %p78
      $region30: #{tpu_custom_call.1} parent=27 // pred_check_branch
        %922 = sbr.rel (%p920) target = $region32
      $region31: #{tpu_custom_call.1} parent=27 // pred_region
        %s923 = smul.u32 32, %s13
      $region32: #{tpu_custom_call.1} parent=27 // pred_fallthru
        _
    $region28: #{tpu_custom_call.1} parent=5 // pred_fallthru
      _
    %p924 = scmp.le.s32.totalorder 2, %s8
    // Predicated region
    $region33: #{tpu_custom_call.1} parent=5 // pred_check
      %p925 = pneg %p924
    $region34: #{tpu_custom_call.1} parent=5 // pred_check_branch
      %927 = sbr.rel (%p925) target = $region36
    $region35: #{tpu_custom_call.1} parent=5 // pred_region
      %s928 = ssub.s32 %s8, 2
      // Predicated region
      $region37: #{tpu_custom_call.1} parent=35 // pred_check
        %p929 = pneg %p84
      $region38: #{tpu_custom_call.1} parent=35 // pred_check_branch
        %931 = sbr.rel (%p929) target = $region40
      $region39: #{tpu_custom_call.1} parent=35 // pred_region
        %s932 = smul.u32 32, %s14
        %p933 = scmp.lt.s32.totalorder %s932, 63
        %s934 = scalar_select %p933, %s932, 63
        %s935 = smul.addr %s934, 8
        %s936 = scalar_lea.vmem %s2, %s935
      $region40: #{tpu_custom_call.1} parent=35 // pred_fallthru
        _
    $region36: #{tpu_custom_call.1} parent=5 // pred_fallthru
      _
  $region6: #{tpu_custom_call.1} parent=0 // loop_footer
    %s12 = sadd.s32 1, %s8
  $region7: #{tpu_custom_call.1} parent=0 // loop_footer_branch
    %7 = sbr.rel target = $region3
  $region8: #{tpu_custom_call.1} parent=0 // loop_exit
    _

</llo_original>
